<compile_context>
chip_gen: v7x
topology: tpu7x:2x2x1
jax: 0.10.0
libtpu: 0.0.40
codegen_flags: <defaults>
</compile_context>

<pallas_src>
import numpy as np
import jax
import jax.numpy as jnp
from jax.experimental import pallas as pl
from jax.experimental.pallas import tpu as pltpu


# ----------------------------- layer metadata ------------------------------ #
def _layer_meta(h, w, c_in, c_out):
    """Static shape bookkeeping for one ConvLayer (3x3 valid conv + 2x2 pool)."""
    h_out, w_out = h - 2, w - 2
    hp, wp = h_out // 2, w_out // 2
    assert hp >= 1 and wp >= 1, "image too small for ConvLayer"
    # conv outputs needed live at flat index q = i*w + j, i<=2*hp-1, j<=2*wp-1
    q_conv = (2 * hp - 1) * w + (2 * wp - 1) + 1
    # pooled bases live at q = 2*pi*w + 2*pj
    q_pool = 2 * (hp - 1) * w + 2 * (wp - 1) + 1
    return dict(h=h, w=w, c_in=c_in, c_out=c_out, hp=hp, wp=wp,
                q_conv=q_conv, q_pool=q_pool)


def _make_sel(meta):
    """(q_pool, hp*wp) 0/1 matrix selecting the stride-2 pooled base positions."""
    sel = np.zeros((meta["q_pool"], meta["hp"] * meta["wp"]), np.float32)
    for pi in range(meta["hp"]):
        for pj in range(meta["wp"]):
            sel[2 * pi * meta["w"] + 2 * pj, pi * meta["wp"] + pj] = 1.0
    return jnp.asarray(sel)


# ------------------------------ Pallas kernel ------------------------------ #
def _make_encoder_kernel(metas):
    """Fused encoder kernel. Per grid step: one image, all layers.

    Inputs per layer: w_wide (9*Cout, Cin), bias (Cout, 1), sel (q_pool, Hp*Wp).
    Data layout: channels on sublanes, flattened spatial (row-major) on lanes.
    """

    def kernel(x_ref, *rest):
        o_ref = rest[-1]
        params = rest[:-1]
        x = x_ref[0]                                           # (C_in, H*W)
        for li, m in enumerate(metas):
            w_ref, b_ref, sel_ref = params[3 * li: 3 * li + 3]
            cout, w_img = m["c_out"], m["w"]
            # One MXU matmul contracts channels for all 9 taps at once:
            # u[tap*cout+co, q] = sum_c W[co,c,dy,dx] * x[c, q]
            u = jnp.dot(w_ref[...], x, preferred_element_type=jnp.float32)
            # conv[co, i*w+j] = sum_tap u[tap*cout+co, (i+dy)*w + (j+dx)]
            conv = None
            for dy in range(3):
                for dx in range(3):
                    t = dy * 3 + dx
                    off = dy * w_img + dx
                    piece = u[t * cout:(t + 1) * cout, off:off + m["q_conv"]]
                    conv = piece if conv is None else conv + piece
            # 2x2 max-pool before bias/tanh (exact: tanh monotone, bias per-ch)
            pooled = None
            for a in range(2):
                for b in range(2):
                    off = a * w_img + b
                    piece = conv[:, off:off + m["q_pool"]]
                    pooled = piece if pooled is None else jnp.maximum(pooled, piece)
            # Gather the stride-2 pooled grid with a tiny 0/1 selection matmul,
            # then a single bias + tanh on the compact (Cout, Hp*Wp) tensor.
            z = jnp.dot(pooled, sel_ref[...], preferred_element_type=jnp.float32)
            x = jnp.tanh(z + b_ref[...])                       # (Cout, Hp*Wp)
        o_ref[0] = x.astype(o_ref.dtype)

    return kernel


# ------------------------------ JAX wrapper -------------------------------- #
def actor_encode(obs_nchw, params_torch):
    """Actor.encoder forward: NCHW image -> flattened features (torch order)."""
    n, c0, h, w = obs_nchw.shape
    x = obs_nchw.reshape(n, c0, h * w)          # channel-major; spatial on lanes

    metas, kernel_inputs, in_specs = [], [], []
    in_specs.append(pl.BlockSpec((1, c0, h * w), lambda i: (i, 0, 0)))
    ch, cw, cin = h, w, c0
    for w_t, b in params_torch:                 # w_t: (Cout, Cin, 3, 3) torch layout
        cout = w_t.shape[0]
        m = _layer_meta(ch, cw, cin, cout)
        metas.append(m)
        # W_wide[tap*Cout+co, c] = w_t[co, c, dy, dx], tap = dy*3 + dx
        w_wide = jnp.transpose(w_t, (2, 3, 0, 1)).reshape(9 * cout, cin)
        b_col = b.reshape(cout, 1)
        sel = _make_sel(m)
        kernel_inputs += [w_wide, b_col, sel]
        in_specs += [
            pl.BlockSpec((9 * cout, cin), lambda i: (0, 0)),
            pl.BlockSpec((cout, 1), lambda i: (0, 0)),
            pl.BlockSpec(sel.shape, lambda i: (0, 0)),
        ]
        ch, cw, cin = m["hp"], m["wp"], cout

    feat_c, feat_s = cin, ch * cw               # final (C, Hp*Wp) per image
    out = pl.pallas_call(
        _make_encoder_kernel(metas),
        out_shape=jax.ShapeDtypeStruct((n, feat_c, feat_s), jnp.float32),
        grid_spec=pltpu.PrefetchScalarGridSpec(
            num_scalar_prefetch=0,
            grid=(n,),
            in_specs=in_specs,
            out_specs=pl.BlockSpec((1, feat_c, feat_s), lambda i: (i, 0, 0)),
        ),
        compiler_params=pltpu.CompilerParams(dimension_semantics=("parallel",)),
    )(x, *kernel_inputs)
    # (N, C, Hp*Wp) is already torch-NCHW-flatten order: just merge the dims.
    return out.reshape(n, feat_c * feat_s)


# -------------------- deterministic parameter construction ----------------- #
def orthogonal_2d(key, rows, cols):
    """Mimics torch.nn.init.orthogonal_ (gain=1) on a (rows, cols) matrix."""
    big, small = max(rows, cols), min(rows, cols)
    a = jax.random.normal(key, (big, small), dtype=jnp.float32)
    q, r = jnp.linalg.qr(a)
    q = q * jnp.sign(jnp.diagonal(r))
    if rows < cols:
        q = q.T
    return q[:rows, :cols]


def make_params(key, conv_channels):
    """Torch-layout (weight, bias) per ConvLayer, orthogonal init + zero bias."""
    params_torch = []
    for cin, cout in zip(conv_channels[:-1], conv_channels[1:]):
        key, sub = jax.random.split(key)
        w2d = orthogonal_2d(sub, cout, cin * 9)          # (Cout, Cin*3*3)
        w_t = w2d.reshape(cout, cin, 3, 3)               # torch layout
        b = jnp.zeros((cout,), jnp.float32)              # constant_(bias, 0)
        params_torch.append((w_t, b))
    return params_torch


# --------------------------------- reference -------------------------------- #
def reference_encode(obs_nchw, params_torch):
    x = jnp.transpose(obs_nchw, (0, 2, 3, 1))
    for w_t, b in params_torch:
        w_hwio = jnp.transpose(w_t, (2, 3, 1, 0))
        y = jax.lax.conv_general_dilated(
            x, w_hwio, window_strides=(1, 1), padding="VALID",
            dimension_numbers=("NHWC", "HWIO", "NHWC"))
        y = jnp.tanh(y + b)
        y = jax.lax.reduce_window(
            y, -jnp.inf, jax.lax.max, (1, 2, 2, 1), (1, 2, 2, 1), "VALID")
        x = y
    x = jnp.transpose(x, (0, 3, 1, 2))
    return x.reshape(x.shape[0], -1)


# ----------------------------------- main ----------------------------------- #
if __name__ == "__main__":
    key = jax.random.PRNGKey(0)
    conv_channels = [4, 8, 16]      # Actor(img_h, img_w, conv_channels)
    img_h = img_w = 16
    batch = 2

    key, pkey, xkey = jax.random.split(key, 3)
    params_torch = make_params(pkey, conv_channels)
    obs = jax.random.normal(
        xkey, (batch, conv_channels[0], img_h, img_w), dtype=jnp.float32)

    encode = jax.jit(actor_encode)
    feats = jax.block_until_ready(encode(obs, params_torch))

    # hidden_size computed the same way Actor.__init__ does (from encoder output)
    hidden_size = feats.shape[1]
    assert hidden_size == 16 * 2 * 2, hidden_size

    ref = reference_encode(obs, params_torch)
    assert feats.shape == ref.shape, (feats.shape, ref.shape)
    max_err = float(jnp.max(jnp.abs(feats - ref)))
    assert max_err < 5e-2, max_err

    print("KERNEL_OK")
</pallas_src>

<mosaic_0001>
module attributes {stable_mosaic.version = 11 : i64} {
  func.func @kernel(%arg0: i32, %arg1: memref<1x4x256xf32, #tpu.memory_space<vmem>>, %arg2: memref<72x4xf32, #tpu.memory_space<vmem>>, %arg3: memref<8x1xf32, #tpu.memory_space<vmem>>, %arg4: memref<205x49xf32, #tpu.memory_space<vmem>>, %arg5: memref<144x8xf32, #tpu.memory_space<vmem>>, %arg6: memref<16x1xf32, #tpu.memory_space<vmem>>, %arg7: memref<17x4xf32, #tpu.memory_space<vmem>>, %arg8: memref<1x16x4xf32, #tpu.memory_space<vmem>>) attributes {dimension_semantics = [#tpu.dimension_semantics<parallel>], iteration_bounds = array<i64: 2>, scalar_prefetch = 0 : i64, scratch_operands = 0 : i64, tpu.core_type = #tpu.core_type<tc>, window_params = [{transform_indices = @transform_0, window_bounds = array<i64: 1, 4, 256>}, {pipeline_mode = #tpu.pipeline_mode<synchronous>, transform_indices = @transform_1, window_bounds = array<i64: 72, 4>}, {pipeline_mode = #tpu.pipeline_mode<synchronous>, transform_indices = @transform_2, window_bounds = array<i64: 8, 1>}, {pipeline_mode = #tpu.pipeline_mode<synchronous>, transform_indices = @transform_3, window_bounds = array<i64: 205, 49>}, {pipeline_mode = #tpu.pipeline_mode<synchronous>, transform_indices = @transform_4, window_bounds = array<i64: 144, 8>}, {pipeline_mode = #tpu.pipeline_mode<synchronous>, transform_indices = @transform_5, window_bounds = array<i64: 16, 1>}, {pipeline_mode = #tpu.pipeline_mode<synchronous>, transform_indices = @transform_6, window_bounds = array<i64: 17, 4>}, {transform_indices = @transform_7, window_bounds = array<i64: 1, 16, 4>}]} {
    %c0 = arith.constant 0 : index
    %c0_0 = arith.constant 0 : index
    %c0_1 = arith.constant 0 : index
    %0 = vector.load %arg1[%c0, %c0_0, %c0_1] : memref<1x4x256xf32, #tpu.memory_space<vmem>>, vector<1x4x256xf32>
    %1 = vector.shape_cast %0 : vector<1x4x256xf32> to vector<4x256xf32>
    %c0_2 = arith.constant 0 : index
    %c0_3 = arith.constant 0 : index
    %2 = vector.load %arg2[%c0_2, %c0_3] : memref<72x4xf32, #tpu.memory_space<vmem>>, vector<72x4xf32>
    %cst = arith.constant dense<0.000000e+00> : vector<72x256xf32>
    %3 = tpu.matmul %2, %1, %cst {dimension_numbers = #tpu.dot_dimension_numbers<[1], [0], [0], [1], [0, 0, 1, 1], [], []>} : vector<72x4xf32>, vector<4x256xf32>, vector<72x256xf32> -> vector<72x256xf32>
    %4 = vector.extract_strided_slice %3 {offsets = [0, 0], sizes = [8, 222], strides = [1, 1]} : vector<72x256xf32> to vector<8x222xf32>
    %5 = vector.extract_strided_slice %3 {offsets = [8, 1], sizes = [8, 222], strides = [1, 1]} : vector<72x256xf32> to vector<8x222xf32>
    %6 = arith.addf %4, %5 : vector<8x222xf32>
    %7 = vector.extract_strided_slice %3 {offsets = [16, 2], sizes = [8, 222], strides = [1, 1]} : vector<72x256xf32> to vector<8x222xf32>
    %8 = arith.addf %6, %7 : vector<8x222xf32>
    %9 = vector.extract_strided_slice %3 {offsets = [24, 16], sizes = [8, 222], strides = [1, 1]} : vector<72x256xf32> to vector<8x222xf32>
    %10 = arith.addf %8, %9 : vector<8x222xf32>
    %11 = vector.extract_strided_slice %3 {offsets = [32, 17], sizes = [8, 222], strides = [1, 1]} : vector<72x256xf32> to vector<8x222xf32>
    %12 = arith.addf %10, %11 : vector<8x222xf32>
    %13 = vector.extract_strided_slice %3 {offsets = [40, 18], sizes = [8, 222], strides = [1, 1]} : vector<72x256xf32> to vector<8x222xf32>
    %14 = arith.addf %12, %13 : vector<8x222xf32>
    %15 = vector.extract_strided_slice %3 {offsets = [48, 32], sizes = [8, 222], strides = [1, 1]} : vector<72x256xf32> to vector<8x222xf32>
    %16 = arith.addf %14, %15 : vector<8x222xf32>
    %17 = vector.extract_strided_slice %3 {offsets = [56, 33], sizes = [8, 222], strides = [1, 1]} : vector<72x256xf32> to vector<8x222xf32>
    %18 = arith.addf %16, %17 : vector<8x222xf32>
    %19 = vector.extract_strided_slice %3 {offsets = [64, 34], sizes = [8, 222], strides = [1, 1]} : vector<72x256xf32> to vector<8x222xf32>
    %20 = arith.addf %18, %19 : vector<8x222xf32>
    %21 = vector.extract_strided_slice %20 {offsets = [0, 0], sizes = [8, 205], strides = [1, 1]} : vector<8x222xf32> to vector<8x205xf32>
    %22 = vector.extract_strided_slice %20 {offsets = [0, 1], sizes = [8, 205], strides = [1, 1]} : vector<8x222xf32> to vector<8x205xf32>
    %23 = arith.maximumf %21, %22 : vector<8x205xf32>
    %24 = vector.extract_strided_slice %20 {offsets = [0, 16], sizes = [8, 205], strides = [1, 1]} : vector<8x222xf32> to vector<8x205xf32>
    %25 = arith.maximumf %23, %24 : vector<8x205xf32>
    %26 = vector.extract_strided_slice %20 {offsets = [0, 17], sizes = [8, 205], strides = [1, 1]} : vector<8x222xf32> to vector<8x205xf32>
    %27 = arith.maximumf %25, %26 : vector<8x205xf32>
    %c0_4 = arith.constant 0 : index
    %c0_5 = arith.constant 0 : index
    %28 = vector.load %arg4[%c0_4, %c0_5] : memref<205x49xf32, #tpu.memory_space<vmem>>, vector<205x49xf32>
    %cst_6 = arith.constant dense<0.000000e+00> : vector<8x49xf32>
    %29 = tpu.matmul %27, %28, %cst_6 {dimension_numbers = #tpu.dot_dimension_numbers<[1], [0], [0], [1], [0, 0, 1, 1], [], []>} : vector<8x205xf32>, vector<205x49xf32>, vector<8x49xf32> -> vector<8x49xf32>
    %c0_7 = arith.constant 0 : index
    %c0_8 = arith.constant 0 : index
    %30 = vector.load %arg3[%c0_7, %c0_8] : memref<8x1xf32, #tpu.memory_space<vmem>>, vector<8x1xf32>
    %31 = vector.broadcast %30 : vector<8x1xf32> to vector<8x49xf32>
    %32 = arith.addf %29, %31 : vector<8x49xf32>
    %33 = math.tanh %32 : vector<8x49xf32>
    %c0_9 = arith.constant 0 : index
    %c0_10 = arith.constant 0 : index
    %34 = vector.load %arg5[%c0_9, %c0_10] : memref<144x8xf32, #tpu.memory_space<vmem>>, vector<144x8xf32>
    %cst_11 = arith.constant dense<0.000000e+00> : vector<144x49xf32>
    %35 = tpu.matmul %34, %33, %cst_11 {dimension_numbers = #tpu.dot_dimension_numbers<[1], [0], [0], [1], [0, 0, 1, 1], [], []>} : vector<144x8xf32>, vector<8x49xf32>, vector<144x49xf32> -> vector<144x49xf32>
    %36 = vector.extract_strided_slice %35 {offsets = [0, 0], sizes = [16, 25], strides = [1, 1]} : vector<144x49xf32> to vector<16x25xf32>
    %37 = vector.extract_strided_slice %35 {offsets = [16, 1], sizes = [16, 25], strides = [1, 1]} : vector<144x49xf32> to vector<16x25xf32>
    %38 = arith.addf %36, %37 : vector<16x25xf32>
    %39 = vector.extract_strided_slice %35 {offsets = [32, 2], sizes = [16, 25], strides = [1, 1]} : vector<144x49xf32> to vector<16x25xf32>
    %40 = arith.addf %38, %39 : vector<16x25xf32>
    %41 = vector.extract_strided_slice %35 {offsets = [48, 7], sizes = [16, 25], strides = [1, 1]} : vector<144x49xf32> to vector<16x25xf32>
    %42 = arith.addf %40, %41 : vector<16x25xf32>
    %43 = vector.extract_strided_slice %35 {offsets = [64, 8], sizes = [16, 25], strides = [1, 1]} : vector<144x49xf32> to vector<16x25xf32>
    %44 = arith.addf %42, %43 : vector<16x25xf32>
    %45 = vector.extract_strided_slice %35 {offsets = [80, 9], sizes = [16, 25], strides = [1, 1]} : vector<144x49xf32> to vector<16x25xf32>
    %46 = arith.addf %44, %45 : vector<16x25xf32>
    %47 = vector.extract_strided_slice %35 {offsets = [96, 14], sizes = [16, 25], strides = [1, 1]} : vector<144x49xf32> to vector<16x25xf32>
    %48 = arith.addf %46, %47 : vector<16x25xf32>
    %49 = vector.extract_strided_slice %35 {offsets = [112, 15], sizes = [16, 25], strides = [1, 1]} : vector<144x49xf32> to vector<16x25xf32>
    %50 = arith.addf %48, %49 : vector<16x25xf32>
    %51 = vector.extract_strided_slice %35 {offsets = [128, 16], sizes = [16, 25], strides = [1, 1]} : vector<144x49xf32> to vector<16x25xf32>
    %52 = arith.addf %50, %51 : vector<16x25xf32>
    %53 = vector.extract_strided_slice %52 {offsets = [0, 0], sizes = [16, 17], strides = [1, 1]} : vector<16x25xf32> to vector<16x17xf32>
    %54 = vector.extract_strided_slice %52 {offsets = [0, 1], sizes = [16, 17], strides = [1, 1]} : vector<16x25xf32> to vector<16x17xf32>
    %55 = arith.maximumf %53, %54 : vector<16x17xf32>
    %56 = vector.extract_strided_slice %52 {offsets = [0, 7], sizes = [16, 17], strides = [1, 1]} : vector<16x25xf32> to vector<16x17xf32>
    %57 = arith.maximumf %55, %56 : vector<16x17xf32>
    %58 = vector.extract_strided_slice %52 {offsets = [0, 8], sizes = [16, 17], strides = [1, 1]} : vector<16x25xf32> to vector<16x17xf32>
    %59 = arith.maximumf %57, %58 : vector<16x17xf32>
    %c0_12 = arith.constant 0 : index
    %c0_13 = arith.constant 0 : index
    %60 = vector.load %arg7[%c0_12, %c0_13] : memref<17x4xf32, #tpu.memory_space<vmem>>, vector<17x4xf32>
    %cst_14 = arith.constant dense<0.000000e+00> : vector<16x4xf32>
    %61 = tpu.matmul %59, %60, %cst_14 {dimension_numbers = #tpu.dot_dimension_numbers<[1], [0], [0], [1], [0, 0, 1, 1], [], []>} : vector<16x17xf32>, vector<17x4xf32>, vector<16x4xf32> -> vector<16x4xf32>
    %c0_15 = arith.constant 0 : index
    %c0_16 = arith.constant 0 : index
    %62 = vector.load %arg6[%c0_15, %c0_16] : memref<16x1xf32, #tpu.memory_space<vmem>>, vector<16x1xf32>
    %63 = vector.broadcast %62 : vector<16x1xf32> to vector<16x4xf32>
    %64 = arith.addf %61, %63 : vector<16x4xf32>
    %65 = math.tanh %64 : vector<16x4xf32>
    %c0_17 = arith.constant 0 : index
    %c0_18 = arith.constant 0 : index
    %c0_19 = arith.constant 0 : index
    %66 = vector.load %arg8[%c0_17, %c0_18, %c0_19] : memref<1x16x4xf32, #tpu.memory_space<vmem>>, vector<1x16x4xf32>
    %67 = vector.shape_cast %66 : vector<1x16x4xf32> to vector<16x4xf32>
    %68 = vector.shape_cast %65 : vector<16x4xf32> to vector<1x16x4xf32>
    tpu.vector_store %arg8[%c0_17, %c0_18, %c0_19], %68 {strides = array<i32>} : memref<1x16x4xf32, #tpu.memory_space<vmem>>, vector<1x16x4xf32>,
    return
  }
  func.func @transform_0(%arg0: i32) -> (i32, i32, i32) {
    %c0_i32 = arith.constant 0 : i32
    %c0_i32_0 = arith.constant 0 : i32
    %c0_i32_1 = arith.constant 0 : i32
    return %arg0, %c0_i32, %c0_i32_0 : i32, i32, i32
  }
  func.func @transform_1(%arg0: i32) -> (i32, i32) {
    %c0_i32 = arith.constant 0 : i32
    %c0_i32_0 = arith.constant 0 : i32
    %c0_i32_1 = arith.constant 0 : i32
    return %c0_i32, %c0_i32_0 : i32, i32
  }
  func.func @transform_2(%arg0: i32) -> (i32, i32) {
    %c0_i32 = arith.constant 0 : i32
    %c0_i32_0 = arith.constant 0 : i32
    %c0_i32_1 = arith.constant 0 : i32
    return %c0_i32, %c0_i32_0 : i32, i32
  }
  func.func @transform_3(%arg0: i32) -> (i32, i32) {
    %c0_i32 = arith.constant 0 : i32
    %c0_i32_0 = arith.constant 0 : i32
    %c0_i32_1 = arith.constant 0 : i32
    return %c0_i32, %c0_i32_0 : i32, i32
  }
  func.func @transform_4(%arg0: i32) -> (i32, i32) {
    %c0_i32 = arith.constant 0 : i32
    %c0_i32_0 = arith.constant 0 : i32
    %c0_i32_1 = arith.constant 0 : i32
    return %c0_i32, %c0_i32_0 : i32, i32
  }
  func.func @transform_5(%arg0: i32) -> (i32, i32) {
    %c0_i32 = arith.constant 0 : i32
    %c0_i32_0 = arith.constant 0 : i32
    %c0_i32_1 = arith.constant 0 : i32
    return %c0_i32, %c0_i32_0 : i32, i32
  }
  func.func @transform_6(%arg0: i32) -> (i32, i32) {
    %c0_i32 = arith.constant 0 : i32
    %c0_i32_0 = arith.constant 0 : i32
    %c0_i32_1 = arith.constant 0 : i32
    return %c0_i32, %c0_i32_0 : i32, i32
  }
  func.func @transform_7(%arg0: i32) -> (i32, i32, i32) {
    %c0_i32 = arith.constant 0 : i32
    %c0_i32_0 = arith.constant 0 : i32
    %c0_i32_1 = arith.constant 0 : i32
    return %arg0, %c0_i32, %c0_i32_0 : i32, i32, i32
  }
}

</mosaic_0001>

<llo_original>
// kernel: actor_encode.1
$region0: #{actor_encode.1}
  #allocation0 [shape = 'u32[]', space=smem, size = 0x4, offset = 0x4, fixed_abs, tag = 'smem constant byte address 0x4 - core index']
  #allocation1 [shape = 'u32[144,128]{1,0:T(1,128)}', space=vmem, size = 0x12000, scoped, tag = 'internal scratch']
  %s0 = inlined_call_operand.vmem [shape: f32[2,4,256], index: 0, kind: input, shape index: {}]
  %s1 = inlined_call_operand.vmem [shape: f32[72,4], index: 1, kind: input, shape index: {}]
  %s2 = inlined_call_operand.vmem [shape: f32[8,1], index: 2, kind: input, shape index: {}]
  %s3 = inlined_call_operand.vmem [shape: f32[205,49], index: 3, kind: input, shape index: {}]
  %s4 = inlined_call_operand.vmem [shape: f32[144,8], index: 4, kind: input, shape index: {}]
  %s5 = inlined_call_operand.vmem [shape: f32[16,1], index: 5, kind: input, shape index: {}]
  %s6 = inlined_call_operand.vmem [shape: f32[17,4], index: 6, kind: input, shape index: {}]
  %s7 = inlined_call_operand.vmem [shape: f32[2,16,4], index: 7, kind: output, shape index: {}]
  %s8 = sld [smem:[#allocation0]]
  $region61: #{actor_encode.1} parent=0
    _
  %s10 = ssub.s32 1, %s8
  %s11 = scalar_select 0, %s10, %s8
  loop: start=0, step=1, limit=4
  $region2: #{actor_encode.1} parent=0 // loop_pre_header
    _
  $region3: #{actor_encode.1} parent=0 // loop_header
    %s13 = sphi 0, %s17
    %p14 = scmp.ge.s32.totalorder %s13, 4
    %s23 = sphi 0, %s25
    %s26 = sphi 0, %s23
    %s27 = sphi 0, %s26
    %s43 = sphi 0, %s27
    %s47 = sphi 0, %s47
    %s49 = sphi 0, %s47
    %s50 = sphi 0, %s49
    %s64 = sphi 0, %s50
    %s68 = sphi 0, %s68
    %s70 = sphi 0, %s68
    %s71 = sphi 0, %s70
    %s85 = sphi 0, %s71
    %s89 = sphi 0, %s89
    %s91 = sphi 0, %s89
    %s92 = sphi 0, %s91
    %s106 = sphi 0, %s92
    %s110 = sphi 0, %s110
    %s112 = sphi 0, %s110
    %s113 = sphi 0, %s112
    %s127 = sphi 0, %s113
    %s131 = sphi 0, %s131
    %s133 = sphi 0, %s131
    %s134 = sphi 0, %s133
    %s148 = sphi 0, %s134
    %s152 = sphi 0, %s152
    %s154 = sphi 0, %s152
    %s155 = sphi 0, %s154
    %s169 = sphi 0, %s155
    %s175 = sphi 0, %s177
    %s178 = sphi 0, %s175
    %s179 = sphi 0, %s178
    %s195 = sphi 0, %s179
  $region4: #{actor_encode.1} parent=0 // loop_header_branch
    %16 = sbr.rel (%p14) target = $region8
  $region5: #{actor_encode.1} parent=0 // loop_body
    %s18 = ssub.s32 %s13, 1
    %s19 = ssub.s32 %s13, 2
    %s20 = sadd.s32 %s13, 1
    %s21 = ssub.s32 %s13, %s20
    %p22 = scmp.eq.s32.totalorder %s21, 0
    %s24 = sadd.s32 %s23, 1
    %s25 = scalar_select %p22, %s23, %s24
    %p28 = pneg %p22
    %p29 = scmp.eq.s32.totalorder %s13, 1
    %p30 = por %p28, %p29
    %p31 = scmp.ne.s32.totalorder %s23, %s26
    %p32 = scmp.eq.s32.totalorder %s13, 0
    %p33 = por %p31, %p32
    %p34 = scmp.ne.s32.totalorder %s23, %s26
    %p35 = scmp.eq.s32.totalorder %s18, 1
    %p36 = por %p34, %p35
    %p37 = scmp.ne.s32.totalorder %s26, %s27
    %p38 = scmp.eq.s32.totalorder %s18, 0
    %p39 = por %p37, %p38
    %p40 = scmp.ne.s32.totalorder %s26, %s27
    %p41 = scmp.eq.s32.totalorder %s19, 1
    %p42 = por %p40, %p41
    %p44 = scmp.ne.s32.totalorder %s27, %s43
    %p45 = scmp.eq.s32.totalorder %s19, 0
    %p46 = por %p44, %p45
    %s48 = sadd.s32 %s47, 1
    %p51 = scmp.eq.s32.totalorder %s13, 1
    %p52 = scmp.ne.s32.totalorder %s47, %s49
    %p53 = scmp.eq.s32.totalorder %s13, 0
    %p54 = por %p52, %p53
    %p55 = scmp.ne.s32.totalorder %s47, %s49
    %p56 = scmp.eq.s32.totalorder %s18, 1
    %p57 = por %p55, %p56
    %p58 = scmp.ne.s32.totalorder %s49, %s50
    %p59 = scmp.eq.s32.totalorder %s18, 0
    %p60 = por %p58, %p59
    %p61 = scmp.ne.s32.totalorder %s49, %s50
    %p62 = scmp.eq.s32.totalorder %s19, 1
    %p63 = por %p61, %p62
    %p65 = scmp.ne.s32.totalorder %s50, %s64
    %p66 = scmp.eq.s32.totalorder %s19, 0
    %p67 = por %p65, %p66
    %s69 = sadd.s32 %s68, 1
    %p72 = scmp.eq.s32.totalorder %s13, 1
    %p73 = scmp.ne.s32.totalorder %s68, %s70
    %p74 = scmp.eq.s32.totalorder %s13, 0
    %p75 = por %p73, %p74
    %p76 = scmp.ne.s32.totalorder %s68, %s70
    %p77 = scmp.eq.s32.totalorder %s18, 1
    %p78 = por %p76, %p77
    %p79 = scmp.ne.s32.totalorder %s70, %s71
    %p80 = scmp.eq.s32.totalorder %s18, 0
    %p81 = por %p79, %p80
    %p82 = scmp.ne.s32.totalorder %s70, %s71
    %p83 = scmp.eq.s32.totalorder %s19, 1
    %p84 = por %p82, %p83
    %p86 = scmp.ne.s32.totalorder %s71, %s85
    %p87 = scmp.eq.s32.totalorder %s19, 0
    %p88 = por %p86, %p87
    %s90 = sadd.s32 %s89, 1
    %p93 = scmp.eq.s32.totalorder %s13, 1
    %p94 = scmp.ne.s32.totalorder %s89, %s91
    %p95 = scmp.eq.s32.totalorder %s13, 0
    %p96 = por %p94, %p95
    %p97 = scmp.ne.s32.totalorder %s89, %s91
    %p98 = scmp.eq.s32.totalorder %s18, 1
    %p99 = por %p97, %p98
    %p100 = scmp.ne.s32.totalorder %s91, %s92
    %p101 = scmp.eq.s32.totalorder %s18, 0
    %p102 = por %p100, %p101
    %p103 = scmp.ne.s32.totalorder %s91, %s92
    %p104 = scmp.eq.s32.totalorder %s19, 1
    %p105 = por %p103, %p104
    %p107 = scmp.ne.s32.totalorder %s92, %s106
    %p108 = scmp.eq.s32.totalorder %s19, 0
    %p109 = por %p107, %p108
    %s111 = sadd.s32 %s110, 1
    %p114 = scmp.eq.s32.totalorder %s13, 1
    %p115 = scmp.ne.s32.totalorder %s110, %s112
    %p116 = scmp.eq.s32.totalorder %s13, 0
    %p117 = por %p115, %p116
    %p118 = scmp.ne.s32.totalorder %s110, %s112
    %p119 = scmp.eq.s32.totalorder %s18, 1
    %p120 = por %p118, %p119
    %p121 = scmp.ne.s32.totalorder %s112, %s113
    %p122 = scmp.eq.s32.totalorder %s18, 0
    %p123 = por %p121, %p122
    %p124 = scmp.ne.s32.totalorder %s112, %s113
    %p125 = scmp.eq.s32.totalorder %s19, 1
    %p126 = por %p124, %p125
    %p128 = scmp.ne.s32.totalorder %s113, %s127
    %p129 = scmp.eq.s32.totalorder %s19, 0
    %p130 = por %p128, %p129
    %s132 = sadd.s32 %s131, 1
    %p135 = scmp.eq.s32.totalorder %s13, 1
    %p136 = scmp.ne.s32.totalorder %s131, %s133
    %p137 = scmp.eq.s32.totalorder %s13, 0
    %p138 = por %p136, %p137
    %p139 = scmp.ne.s32.totalorder %s131, %s133
    %p140 = scmp.eq.s32.totalorder %s18, 1
    %p141 = por %p139, %p140
    %p142 = scmp.ne.s32.totalorder %s133, %s134
    %p143 = scmp.eq.s32.totalorder %s18, 0
    %p144 = por %p142, %p143
    %p145 = scmp.ne.s32.totalorder %s133, %s134
    %p146 = scmp.eq.s32.totalorder %s19, 1
    %p147 = por %p145, %p146
    %p149 = scmp.ne.s32.totalorder %s134, %s148
    %p150 = scmp.eq.s32.totalorder %s19, 0
    %p151 = por %p149, %p150
    %s153 = sadd.s32 %s152, 1
    %p156 = scmp.eq.s32.totalorder %s13, 1
    %p157 = scmp.ne.s32.totalorder %s152, %s154
    %p158 = scmp.eq.s32.totalorder %s13, 0
    %p159 = por %p157, %p158
    %p160 = scmp.ne.s32.totalorder %s152, %s154
    %p161 = scmp.eq.s32.totalorder %s18, 1
    %p162 = por %p160, %p161
    %p163 = scmp.ne.s32.totalorder %s154, %s155
    %p164 = scmp.eq.s32.totalorder %s18, 0
    %p165 = por %p163, %p164
    %p166 = scmp.ne.s32.totalorder %s154, %s155
    %p167 = scmp.eq.s32.totalorder %s19, 1
    %p168 = por %p166, %p167
    %p170 = scmp.ne.s32.totalorder %s155, %s169
    %p171 = scmp.eq.s32.totalorder %s19, 0
    %p172 = por %p170, %p171
    %s173 = ssub.s32 %s13, %s20
    %p174 = scmp.eq.s32.totalorder %s173, 0
    %s176 = sadd.s32 %s175, 1
    %s177 = scalar_select %p174, %s175, %s176
    %p180 = pneg %p174
    %p181 = scmp.eq.s32.totalorder %s13, 1
    %p182 = por %p180, %p181
    %p183 = scmp.ne.s32.totalorder %s175, %s178
    %p184 = scmp.eq.s32.totalorder %s13, 0
    %p185 = por %p183, %p184
    %p186 = scmp.ne.s32.totalorder %s175, %s178
    %p187 = scmp.eq.s32.totalorder %s18, 1
    %p188 = por %p186, %p187
    %p189 = scmp.ne.s32.totalorder %s178, %s179
    %p190 = scmp.eq.s32.totalorder %s18, 0
    %p191 = por %p189, %p190
    %p192 = scmp.ne.s32.totalorder %s178, %s179
    %p193 = scmp.eq.s32.totalorder %s19, 1
    %p194 = por %p192, %p193
    %p196 = scmp.ne.s32.totalorder %s179, %s195
    %p197 = scmp.eq.s32.totalorder %s19, 0
    %p198 = por %p196, %p197
    %p199 = scmp.le.s32.totalorder 1, %s13
    %p200 = scmp.lt.s32.totalorder %s13, 3
    %p201 = pnand %p199, %p200
    %p202 = pneg %p201
    // Predicated region
    $region9: #{actor_encode.1} parent=5 // pred_check
      _
    $region10: #{actor_encode.1} parent=5 // pred_check_branch
      %204 = sbr.rel (%p201) target = $region12
    $region11: #{actor_encode.1} parent=5 // pred_region
      %s205 = ssub.s32 %s13, 1
      // Predicated region
      $region13: #{actor_encode.1} parent=11 // pred_check
        %p206 = pneg %p60
      $region14: #{actor_encode.1} parent=11 // pred_check_branch
        %208 = sbr.rel (%p206) target = $region16
      $region15: #{actor_encode.1} parent=11 // pred_region
        _
      $region16: #{actor_encode.1} parent=11 // pred_fallthru
        _
      // Predicated region
      $region17: #{actor_encode.1} parent=11 // pred_check
        %p209 = pneg %p81
      $region18: #{actor_encode.1} parent=11 // pred_check_branch
        %211 = sbr.rel (%p209) target = $region20
      $region19: #{actor_encode.1} parent=11 // pred_region
        _
      $region20: #{actor_encode.1} parent=11 // pred_fallthru
        _
      // Predicated region
      $region21: #{actor_encode.1} parent=11 // pred_check
        %p212 = pneg %p102
      $region22: #{actor_encode.1} parent=11 // pred_check_branch
        %214 = sbr.rel (%p212) target = $region24
      $region23: #{actor_encode.1} parent=11 // pred_region
        _
      $region24: #{actor_encode.1} parent=11 // pred_fallthru
        _
      // Predicated region
      $region25: #{actor_encode.1} parent=11 // pred_check
        %p215 = pneg %p123
      $region26: #{actor_encode.1} parent=11 // pred_check_branch
        %217 = sbr.rel (%p215) target = $region28
      $region27: #{actor_encode.1} parent=11 // pred_region
        _
      $region28: #{actor_encode.1} parent=11 // pred_fallthru
        _
      // Predicated region
      $region29: #{actor_encode.1} parent=11 // pred_check
        %p218 = pneg %p144
      $region30: #{actor_encode.1} parent=11 // pred_check_branch
        %220 = sbr.rel (%p218) target = $region32
      $region31: #{actor_encode.1} parent=11 // pred_region
        _
      $region32: #{actor_encode.1} parent=11 // pred_fallthru
        _
      // Predicated region
      $region33: #{actor_encode.1} parent=11 // pred_check
        %p221 = pneg %p165
      $region34: #{actor_encode.1} parent=11 // pred_check_branch
        %223 = sbr.rel (%p221) target = $region36
      $region35: #{actor_encode.1} parent=11 // pred_region
        _
      $region36: #{actor_encode.1} parent=11 // pred_fallthru
        _
    $region12: #{actor_encode.1} parent=5 // pred_fallthru
      _
    %p224 = scmp.lt.s32.totalorder %s13, 2
    // Predicated region
    $region37: #{actor_encode.1} parent=5 // pred_check
      %p225 = pneg %p224
    $region38: #{actor_encode.1} parent=5 // pred_check_branch
      %227 = sbr.rel (%p225) target = $region40
    $region39: #{actor_encode.1} parent=5 // pred_region
      // Predicated region
      $region41: #{actor_encode.1} parent=39 // pred_check
        %p228 = pneg %p33
      $region42: #{actor_encode.1} parent=39 // pred_check_branch
        %230 = sbr.rel (%p228) target = $region44
      $region43: #{actor_encode.1} parent=39 // pred_region
        %p231 = scmp.lt.s32.totalorder %s13, 1
        %s232 = scalar_select %p231, %s13, 1
        %s233 = smul.addr %s232, 2
        %s234 = smul.addr %s233, 4
        %s235 = scalar_lea.vmem %s0, %s234
      $region44: #{actor_encode.1} parent=39 // pred_fallthru
        _
    $region40: #{actor_encode.1} parent=5 // pred_fallthru
      _
    %p236 = scmp.le.s32.totalorder 1, %s13
    %p237 = scmp.lt.s32.totalorder %s13, 3
    %p238 = pnand %p236, %p237
    %p239 = pneg %p238
    // Predicated region
    $region45: #{actor_encode.1} parent=5 // pred_check
      _
    $region46: #{actor_encode.1} parent=5 // pred_check_branch
      %241 = sbr.rel (%p238) target = $region48
    $region47: #{actor_encode.1} parent=5 // pred_region
      %s242 = ssub.s32 %s13, 1
      %p243 = scmp.lt.s32.totalorder %s18, 1
      %s244 = scalar_select %p243, %s18, 1
      %s245 = smul.addr %s244, 2
      %s246 = smul.addr %s245, 4
      %s247 = scalar_lea.vmem %s0, %s246
      %p248 = pneg %p39
      %p249 = pneg %p36
      %p250 = pneg %p60
      %p251 = pneg %p57
      %p252 = pneg %p81
      %p253 = pneg %p78
      %p254 = pneg %p102
      %p255 = pneg %p99
      %p256 = pneg %p123
      %p257 = pneg %p120
      %p258 = pneg %p144
      %p259 = pneg %p141
      %p260 = pneg %p165
      %p261 = pneg %p162
      %p262 = pneg %p191
      %p263 = pneg %p188
      %p264 = scmp.lt.s32.totalorder %s18, 1
      %s265 = scalar_select %p264, %s18, 1
      %s266 = smul.addr %s265, 2
      %s267 = smul.addr %s266, 8
      %s268 = scalar_lea.vmem %s7, %s267
      %p269 = scmp.lt.s32.totalorder %s18, 1
      %s270 = scalar_select %p269, %s18, 1
      %s271 = smul.addr %s270, 2
      %s272 = smul.addr %s271, 4
      %s273 = scalar_lea.vmem %s0, %s272
      %p274 = scmp.lt.s32.totalorder %s18, 1
      %s275 = scalar_select %p274, %s18, 1
      %s276 = smul.addr %s275, 2
      %s277 = smul.addr %s276, 8
      %s278 = scalar_lea.vmem %s7, %s277
      %v279 = vld [vmem:[%s273] sm:$0xff]
      %v280 = vld [vmem:[%s1] sm:$0xff]
      %v281 = vld [vmem:[%s1 + $0x8] sm:$0xff]
      %v282 = vld [vmem:[%s1 + $0x10] sm:$0xff]
      %v283 = vld [vmem:[%s1 + $0x18] sm:$0xff]
      %v284 = vld [vmem:[%s1 + $0x20] sm:$0xff]
      %v285 = vld [vmem:[%s1 + $0x28] sm:$0xff]
      %v286 = vld [vmem:[%s1 + $0x30] sm:$0xff]
      %v287 = vld [vmem:[%s1 + $0x38] sm:$0xff]
      %v288 = vld [vmem:[%s1 + $0x40] sm:$0xff]
      %v290 = vcombine.high %v279, %v279
      %vm291 = vcmask 31744
      %v293 = vsel %vm291, %v280, 0
      %v296 = vsel %vm291, %v281, 0
      %v299 = vsel %vm291, %v282, 0
      %v302 = vsel %vm291, %v283, 0
      %v305 = vsel %vm291, %v284, 0
      %v308 = vsel %vm291, %v285, 0
      %v311 = vsel %vm291, %v286, 0
      %v314 = vsel %vm291, %v287, 0
      %v317 = vsel %vm291, %v288, 0
      %vm319 = vcmask 1043456
      %v320 = vsel %vm319, %v279, 0
      %v322 = vsel %vm319, %v290, 0
      %324 = vmatprep.subr.mxu0 %v322
      %325 = vmatpush1.msra.mxu0 %v320
      %326 = vmatprep.subr.mxu0 0.0
      %327 = vmatpush1.msra.mxu0 0.0
      %328 = vmatprep.subr.mxu0 0.0
      %329 = vmatpush1.msra.mxu0 0.0
      %330 = vmatprep.subr.mxu0 0.0
      %331 = vmatpush1.msra.mxu0 0.0
      %332 = vmatprep.subr.mxu0 0.0
      %333 = vmatpush1.msra.mxu0 0.0
      %334 = vmatprep.subr.mxu0 0.0
      %335 = vmatpush1.msra.mxu0 0.0
      %336 = vmatprep.subr.mxu0 0.0
      %337 = vmatpush1.msra.mxu0 0.0
      %338 = vmatprep.subr.mxu0 0.0
      %339 = vmatpush1.msra.mxu0 0.0
      %340 = vmatprep.subr.mxu0 0.0
      %341 = vmatpush1.msra.mxu0 0.0
      %342 = vmatprep.subr.mxu0 0.0
      %343 = vmatpush1.msra.mxu0 0.0
      %344 = vmatprep.subr.mxu0 0.0
      %345 = vmatpush1.msra.mxu0 0.0
      %346 = vmatprep.subr.mxu0 0.0
      %347 = vmatpush1.msra.mxu0 0.0
      %348 = vmatprep.subr.mxu0 0.0
      %349 = vmatpush1.msra.mxu0 0.0
      %350 = vmatprep.subr.mxu0 0.0
      %351 = vmatpush1.msra.mxu0 0.0
      %352 = vmatprep.subr.mxu0 0.0
      %353 = vmatpush1.msra.mxu0 0.0
      %354 = vmatprep.subr.mxu0 0.0
      %355 = vmatpush1.msra.mxu0 0.0
      %356 = vmatprep.subr.mxu0 0.0
      %357 = vmatpush1.msra.mxu0 0.0
      %358 = vmatprep.subr.mxu0 0.0
      %359 = vmatpush1.msra.mxu0 0.0
      %360 = vmatprep.subr.mxu0 0.0
      %361 = vmatpush1.msra.mxu0 0.0
      %362 = vmatprep.subr.mxu0 0.0
      %363 = vmatpush1.msra.mxu0 0.0
      %364 = vmatprep.subr.mxu0 0.0
      %365 = vmatpush1.msra.mxu0 0.0
      %366 = vmatprep.subr.mxu0 0.0
      %367 = vmatpush1.msra.mxu0 0.0
      %368 = vmatprep.subr.mxu0 0.0
      %369 = vmatpush1.msra.mxu0 0.0
      %370 = vmatprep.subr.mxu0 0.0
      %371 = vmatpush1.msra.mxu0 0.0
      %372 = vmatprep.subr.mxu0 0.0
      %373 = vmatpush1.msra.mxu0 0.0
      %374 = vmatprep.subr.mxu0 0.0
      %375 = vmatpush1.msra.mxu0 0.0
      %376 = vmatprep.subr.mxu0 0.0
      %377 = vmatpush1.msra.mxu0 0.0
      %378 = vmatprep.subr.mxu0 0.0
      %379 = vmatpush1.msra.mxu0 0.0
      %380 = vmatprep.subr.mxu0 0.0
      %381 = vmatpush1.msra.mxu0 0.0
      %382 = vmatprep.subr.mxu0 0.0
      %383 = vmatpush1.msra.mxu0 0.0
      %384 = vmatprep.subr.mxu0 0.0
      %385 = vmatpush1.msra.mxu0 0.0
      %386 = vmatprep.subr.mxu0 0.0
      %387 = vmatpush1.msra.mxu0 0.0
      %388 = vmatprep.mubr.f32.mxu0 0.0
      %389 = vmatmul.mubr.f32.gmra.mrb[0].mxu0 %v293
      %v390 = vpop.f32.mrb[0].mxu0
      %v391 = vadd.f32 0.0, %v390
      %v392 = vpop.f32.mrb[0].mxu0
      %v393 = vadd.f32 0.0, %v392
      %394 = vmatprep.mubr.f32.mxu0 0.0
      %395 = vmatmul.mubr.f32.gmra.mrb[0].mxu0 %v296
      %v396 = vpop.f32.mrb[0].mxu0
      %v397 = vadd.f32 0.0, %v396
      %v398 = vpop.f32.mrb[0].mxu0
      %v399 = vadd.f32 0.0, %v398
      %400 = vmatprep.mubr.f32.mxu0 0.0
      %401 = vmatmul.mubr.f32.gmra.mrb[0].mxu0 %v299
      %v402 = vpop.f32.mrb[0].mxu0
      %v403 = vadd.f32 0.0, %v402
      %v404 = vpop.f32.mrb[0].mxu0
      %v405 = vadd.f32 0.0, %v404
      %406 = vmatprep.mubr.f32.mxu0 0.0
      %407 = vmatmul.mubr.f32.gmra.mrb[0].mxu0 %v302
      %v408 = vpop.f32.mrb[0].mxu0
      %v409 = vadd.f32 0.0, %v408
      %v410 = vpop.f32.mrb[0].mxu0
      %v411 = vadd.f32 0.0, %v410
      %412 = vmatprep.mubr.f32.mxu0 0.0
      %413 = vmatmul.mubr.f32.gmra.mrb[0].mxu0 %v305
      %v414 = vpop.f32.mrb[0].mxu0
      %v415 = vadd.f32 0.0, %v414
      %v416 = vpop.f32.mrb[0].mxu0
      %v417 = vadd.f32 0.0, %v416
      %418 = vmatprep.mubr.f32.mxu0 0.0
      %419 = vmatmul.mubr.f32.gmra.mrb[0].mxu0 %v308
      %v420 = vpop.f32.mrb[0].mxu0
      %v421 = vadd.f32 0.0, %v420
      %v422 = vpop.f32.mrb[0].mxu0
      %v423 = vadd.f32 0.0, %v422
      %424 = vmatprep.mubr.f32.mxu0 0.0
      %425 = vmatmul.mubr.f32.gmra.mrb[0].mxu0 %v311
      %v426 = vpop.f32.mrb[0].mxu0
      %v427 = vadd.f32 0.0, %v426
      %v428 = vpop.f32.mrb[0].mxu0
      %v429 = vadd.f32 0.0, %v428
      %430 = vmatprep.mubr.f32.mxu0 0.0
      %431 = vmatmul.mubr.f32.gmra.mrb[0].mxu0 %v314
      %v432 = vpop.f32.mrb[0].mxu0
      %v433 = vadd.f32 0.0, %v432
      %v434 = vpop.f32.mrb[0].mxu0
      %v435 = vadd.f32 0.0, %v434
      %436 = vmatprep.mubr.f32.mxu0 0.0
      %437 = vmatmul.mubr.f32.gmra.mrb[0].mxu0 %v317
      %v438 = vpop.f32.mrb[0].mxu0
      %v439 = vadd.f32 0.0, %v438
      %v440 = vpop.f32.mrb[0].mxu0
      %v441 = vadd.f32 0.0, %v440
      %442 = vdwg.mxu0
      %445 = vrot.lane.b32.xlu0 %v397, 127
      %v446 = vpop.permute.xlu0 %445
      %447 = vrot.lane.b32.xlu0 %v399, 127
      %v448 = vpop.permute.xlu0 %447
      %vm449 = vcmask 1039360
      %v450 = vsel %vm449, %v446, %v448
      %v453 = vadd.f32 %v391, %v450
      %v454 = vadd.f32 %v393, %v448
      %457 = vrot.lane.b32.xlu0 %v403, 126
      %v458 = vpop.permute.xlu0 %457
      %459 = vrot.lane.b32.xlu0 %v405, 126
      %v460 = vpop.permute.xlu0 %459
      %vm461 = vcmask 1031168
      %v462 = vsel %vm461, %v458, %v460
      %v465 = vadd.f32 %v453, %v462
      %v466 = vadd.f32 %v454, %v460
      %469 = vrot.lane.b32.xlu0 %v409, 112
      %v470 = vpop.permute.xlu0 %469
      %471 = vrot.lane.b32.xlu0 %v411, 112
      %v472 = vpop.permute.xlu0 %471
      %vm473 = vcmask 916480
      %v474 = vsel %vm473, %v470, %v472
      %v477 = vadd.f32 %v465, %v474
      %v478 = vadd.f32 %v466, %v472
      %481 = vrot.lane.b32.xlu0 %v415, 111
      %v482 = vpop.permute.xlu0 %481
      %483 = vrot.lane.b32.xlu0 %v417, 111
      %v484 = vpop.permute.xlu0 %483
      %vm485 = vcmask 908288
      %v486 = vsel %vm485, %v482, %v484
      %v489 = vadd.f32 %v477, %v486
      %v490 = vadd.f32 %v478, %v484
      %493 = vrot.lane.b32.xlu0 %v421, 110
      %v494 = vpop.permute.xlu0 %493
      %495 = vrot.lane.b32.xlu0 %v423, 110
      %v496 = vpop.permute.xlu0 %495
      %vm497 = vcmask 900096
      %v498 = vsel %vm497, %v494, %v496
      %v501 = vadd.f32 %v489, %v498
      %v502 = vadd.f32 %v490, %v496
      %505 = vrot.lane.b32.xlu0 %v427, 96
      %v506 = vpop.permute.xlu0 %505
      %507 = vrot.lane.b32.xlu0 %v429, 96
      %v508 = vpop.permute.xlu0 %507
      %vm509 = vcmask 785408
      %v510 = vsel %vm509, %v506, %v508
      %v513 = vadd.f32 %v501, %v510
      %v514 = vadd.f32 %v502, %v508
      %517 = vrot.lane.b32.xlu0 %v433, 95
      %v518 = vpop.permute.xlu0 %517
      %519 = vrot.lane.b32.xlu0 %v435, 95
      %v520 = vpop.permute.xlu0 %519
      %vm521 = vcmask 777216
      %v522 = vsel %vm521, %v518, %v520
      %v525 = vadd.f32 %v513, %v522
      %v526 = vadd.f32 %v514, %v520
      %529 = vrot.lane.b32.xlu0 %v439, 94
      %v530 = vpop.permute.xlu0 %529
      %531 = vrot.lane.b32.xlu0 %v441, 94
      %v532 = vpop.permute.xlu0 %531
      %vm533 = vcmask 769024
      %v534 = vsel %vm533, %v530, %v532
      %v537 = vadd.f32 %v525, %v534
      %v538 = vadd.f32 %v526, %v532
      %541 = vrot.lane.b32.xlu0 %v537, 127
      %v542 = vpop.permute.xlu0 %541
      %543 = vrot.lane.b32.xlu0 %v538, 127
      %v544 = vpop.permute.xlu0 %543
      %v545 = vsel %vm449, %v542, %v544
      %v548 = vmax.f32 %v537, %v545
      %v549 = vmax.f32 %v538, %v544
      %550 = vrot.lane.b32.xlu0 %v537, 112
      %v551 = vpop.permute.xlu0 %550
      %552 = vrot.lane.b32.xlu0 %v538, 112
      %v553 = vpop.permute.xlu0 %552
      %v554 = vsel %vm473, %v551, %v553
      %v557 = vmax.f32 %v548, %v554
      %v558 = vmax.f32 %v549, %v553
      %559 = vrot.lane.b32.xlu0 %v537, 111
      %v560 = vpop.permute.xlu0 %559
      %561 = vrot.lane.b32.xlu0 %v538, 111
      %v562 = vpop.permute.xlu0 %561
      %v563 = vsel %vm485, %v560, %v562
      %v566 = vmax.f32 %v557, %v563
      %v567 = vmax.f32 %v558, %v562
      %v568 = vld [vmem:[%s3] sm:$0xff]
      %v569 = vld [vmem:[%s3 + $0x8] sm:$0xff]
      %v570 = vld [vmem:[%s3 + $0x10] sm:$0xff]
      %v571 = vld [vmem:[%s3 + $0x18] sm:$0xff]
      %v572 = vld [vmem:[%s3 + $0x20] sm:$0xff]
      %v573 = vld [vmem:[%s3 + $0x28] sm:$0xff]
      %v574 = vld [vmem:[%s3 + $0x30] sm:$0xff]
      %v575 = vld [vmem:[%s3 + $0x38] sm:$0xff]
      %v576 = vld [vmem:[%s3 + $0x40] sm:$0xff]
      %v577 = vld [vmem:[%s3 + $0x48] sm:$0xff]
      %v578 = vld [vmem:[%s3 + $0x50] sm:$0xff]
      %v579 = vld [vmem:[%s3 + $0x58] sm:$0xff]
      %v580 = vld [vmem:[%s3 + $0x60] sm:$0xff]
      %v581 = vld [vmem:[%s3 + $0x68] sm:$0xff]
      %v582 = vld [vmem:[%s3 + $0x70] sm:$0xff]
      %v583 = vld [vmem:[%s3 + $0x78] sm:$0xff]
      %v584 = vld [vmem:[%s3 + $0x80] sm:$0xff]
      %v585 = vld [vmem:[%s3 + $0x88] sm:$0xff]
      %v586 = vld [vmem:[%s3 + $0x90] sm:$0xff]
      %v587 = vld [vmem:[%s3 + $0x98] sm:$0xff]
      %v588 = vld [vmem:[%s3 + $0xa0] sm:$0xff]
      %v589 = vld [vmem:[%s3 + $0xa8] sm:$0xff]
      %v590 = vld [vmem:[%s3 + $0xb0] sm:$0xff]
      %v591 = vld [vmem:[%s3 + $0xb8] sm:$0xff]
      %v592 = vld [vmem:[%s3 + $0xc0] sm:$0xff]
      %v593 = vld [vmem:[%s3 + $0xc8] sm:$0x1f]
      %v594 = vld [vmem:[%s2] sm:$0xff]
      %596 = vset.pattern.permute.xlu0 0
      %597 = vperm.xlu0 %596, %v594
      %v598 = vpop.permute.xlu0 %597
      %vm600 = vcmask 629760
      %v602 = vsel %vm600, %v567, 0
      %vm604 = vcmask 1044480
      %v606 = vsel %vm604, %v593, 0
      %608 = vmatprep.subr.mxu0 0.0
      %609 = vmatpush1.msra.mxu0 %v568
      %610 = vmatprep.subr.mxu0 0.0
      %611 = vmatpush1.msra.mxu0 %v569
      %612 = vmatprep.subr.mxu0 0.0
      %613 = vmatpush1.msra.mxu0 %v570
      %614 = vmatprep.subr.mxu0 0.0
      %615 = vmatpush1.msra.mxu0 %v571
      %616 = vmatprep.subr.mxu0 0.0
      %617 = vmatpush1.msra.mxu0 %v572
      %618 = vmatprep.subr.mxu0 0.0
      %619 = vmatpush1.msra.mxu0 %v573
      %620 = vmatprep.subr.mxu0 0.0
      %621 = vmatpush1.msra.mxu0 %v574
      %622 = vmatprep.subr.mxu0 0.0
      %623 = vmatpush1.msra.mxu0 %v575
      %624 = vmatprep.subr.mxu0 0.0
      %625 = vmatpush1.msra.mxu0 %v576
      %626 = vmatprep.subr.mxu0 0.0
      %627 = vmatpush1.msra.mxu0 %v577
      %628 = vmatprep.subr.mxu0 0.0
      %629 = vmatpush1.msra.mxu0 %v578
      %630 = vmatprep.subr.mxu0 0.0
      %631 = vmatpush1.msra.mxu0 %v579
      %632 = vmatprep.subr.mxu0 0.0
      %633 = vmatpush1.msra.mxu0 %v580
      %634 = vmatprep.subr.mxu0 0.0
      %635 = vmatpush1.msra.mxu0 %v581
      %636 = vmatprep.subr.mxu0 0.0
      %637 = vmatpush1.msra.mxu0 %v582
      %638 = vmatprep.subr.mxu0 0.0
      %639 = vmatpush1.msra.mxu0 %v583
      %640 = vmatprep.subr.mxu0 0.0
      %641 = vmatpush1.msra.mxu0 %v584
      %642 = vmatprep.subr.mxu0 0.0
      %643 = vmatpush1.msra.mxu0 %v585
      %644 = vmatprep.subr.mxu0 0.0
      %645 = vmatpush1.msra.mxu0 %v586
      %646 = vmatprep.subr.mxu0 0.0
      %647 = vmatpush1.msra.mxu0 %v587
      %648 = vmatprep.subr.mxu0 0.0
      %649 = vmatpush1.msra.mxu0 %v588
      %650 = vmatprep.subr.mxu0 0.0
      %651 = vmatpush1.msra.mxu0 %v589
      %652 = vmatprep.subr.mxu0 0.0
      %653 = vmatpush1.msra.mxu0 %v590
      %654 = vmatprep.subr.mxu0 0.0
      %655 = vmatpush1.msra.mxu0 %v591
      %656 = vmatprep.subr.mxu0 0.0
      %657 = vmatpush1.msra.mxu0 %v592
      %658 = vmatprep.subr.mxu0 0.0
      %659 = vmatpush1.msra.mxu0 %v606
      %660 = vmatprep.subr.mxu0 0.0
      %661 = vmatpush1.msra.mxu0 0.0
      %662 = vmatprep.subr.mxu0 0.0
      %663 = vmatpush1.msra.mxu0 0.0
      %664 = vmatprep.subr.mxu0 0.0
      %665 = vmatpush1.msra.mxu0 0.0
      %666 = vmatprep.subr.mxu0 0.0
      %667 = vmatpush1.msra.mxu0 0.0
      %668 = vmatprep.subr.mxu0 0.0
      %669 = vmatpush1.msra.mxu0 0.0
      %670 = vmatprep.subr.mxu0 0.0
      %671 = vmatpush1.msra.mxu0 0.0
      %672 = vmatprep.mubr.f32.mxu0 %v602
      %673 = vmatmul.mubr.f32.gmra.mrb[0].mxu0 %v566
      %v674 = vpop.f32.mrb[0].mxu0
      %v675 = vadd.f32 %v598, %v674
      %v676 = vpop.f32.mrb[0].mxu0
      %677 = vdwg.mxu0
      %v678 = vtanh.pop %v675
      %v679 = vld [vmem:[%s4] sm:$0xff]
      %v680 = vld [vmem:[%s4 + $0x8] sm:$0xff]
      %v681 = vld [vmem:[%s4 + $0x10] sm:$0xff]
      %v682 = vld [vmem:[%s4 + $0x18] sm:$0xff]
      %v683 = vld [vmem:[%s4 + $0x20] sm:$0xff]
      %v684 = vld [vmem:[%s4 + $0x28] sm:$0xff]
      %v685 = vld [vmem:[%s4 + $0x30] sm:$0xff]
      %v686 = vld [vmem:[%s4 + $0x38] sm:$0xff]
      %v687 = vld [vmem:[%s4 + $0x40] sm:$0xff]
      %v688 = vld [vmem:[%s4 + $0x48] sm:$0xff]
      %v689 = vld [vmem:[%s4 + $0x50] sm:$0xff]
      %v690 = vld [vmem:[%s4 + $0x58] sm:$0xff]
      %v691 = vld [vmem:[%s4 + $0x60] sm:$0xff]
      %v692 = vld [vmem:[%s4 + $0x68] sm:$0xff]
      %v693 = vld [vmem:[%s4 + $0x70] sm:$0xff]
      %v694 = vld [vmem:[%s4 + $0x78] sm:$0xff]
      %v695 = vld [vmem:[%s4 + $0x80] sm:$0xff]
      %v696 = vld [vmem:[%s4 + $0x88] sm:$0xff]
      %vm697 = vcmask 64512
      %v699 = vsel %vm697, %v679, 0
      %v702 = vsel %vm697, %v680, 0
      %v705 = vsel %vm697, %v681, 0
      %v708 = vsel %vm697, %v682, 0
      %v711 = vsel %vm697, %v683, 0
      %v714 = vsel %vm697, %v684, 0
      %v717 = vsel %vm697, %v685, 0
      %v720 = vsel %vm697, %v686, 0
      %v723 = vsel %vm697, %v687, 0
      %v726 = vsel %vm697, %v688, 0
      %v729 = vsel %vm697, %v689, 0
      %v732 = vsel %vm697, %v690, 0
      %v735 = vsel %vm697, %v691, 0
      %v738 = vsel %vm697, %v692, 0
      %v741 = vsel %vm697, %v693, 0
      %v744 = vsel %vm697, %v694, 0
      %v747 = vsel %vm697, %v695, 0
      %v750 = vsel %vm697, %v696, 0
      %752 = vmatprep.subr.mxu0 0.0
      %753 = vmatpush1.msra.mxu0 %v678
      %754 = vmatprep.subr.mxu0 0.0
      %755 = vmatpush1.msra.mxu0 0.0
      %756 = vmatprep.subr.mxu0 0.0
      %757 = vmatpush1.msra.mxu0 0.0
      %758 = vmatprep.subr.mxu0 0.0
      %759 = vmatpush1.msra.mxu0 0.0
      %760 = vmatprep.subr.mxu0 0.0
      %761 = vmatpush1.msra.mxu0 0.0
      %762 = vmatprep.subr.mxu0 0.0
      %763 = vmatpush1.msra.mxu0 0.0
      %764 = vmatprep.subr.mxu0 0.0
      %765 = vmatpush1.msra.mxu0 0.0
      %766 = vmatprep.subr.mxu0 0.0
      %767 = vmatpush1.msra.mxu0 0.0
      %768 = vmatprep.subr.mxu0 0.0
      %769 = vmatpush1.msra.mxu0 0.0
      %770 = vmatprep.subr.mxu0 0.0
      %771 = vmatpush1.msra.mxu0 0.0
      %772 = vmatprep.subr.mxu0 0.0
      %773 = vmatpush1.msra.mxu0 0.0
      %774 = vmatprep.subr.mxu0 0.0
      %775 = vmatpush1.msra.mxu0 0.0
      %776 = vmatprep.subr.mxu0 0.0
      %777 = vmatpush1.msra.mxu0 0.0
      %778 = vmatprep.subr.mxu0 0.0
      %779 = vmatpush1.msra.mxu0 0.0
      %780 = vmatprep.subr.mxu0 0.0
      %781 = vmatpush1.msra.mxu0 0.0
      %782 = vmatprep.subr.mxu0 0.0
      %783 = vmatpush1.msra.mxu0 0.0
      %784 = vmatprep.subr.mxu0 0.0
      %785 = vmatpush1.msra.mxu0 0.0
      %786 = vmatprep.subr.mxu0 0.0
      %787 = vmatpush1.msra.mxu0 0.0
      %788 = vmatprep.subr.mxu0 0.0
      %789 = vmatpush1.msra.mxu0 0.0
      %790 = vmatprep.subr.mxu0 0.0
      %791 = vmatpush1.msra.mxu0 0.0
      %792 = vmatprep.subr.mxu0 0.0
      %793 = vmatpush1.msra.mxu0 0.0
      %794 = vmatprep.subr.mxu0 0.0
      %795 = vmatpush1.msra.mxu0 0.0
      %796 = vmatprep.subr.mxu0 0.0
      %797 = vmatpush1.msra.mxu0 0.0
      %798 = vmatprep.subr.mxu0 0.0
      %799 = vmatpush1.msra.mxu0 0.0
      %800 = vmatprep.subr.mxu0 0.0
      %801 = vmatpush1.msra.mxu0 0.0
      %802 = vmatprep.subr.mxu0 0.0
      %803 = vmatpush1.msra.mxu0 0.0
      %804 = vmatprep.subr.mxu0 0.0
      %805 = vmatpush1.msra.mxu0 0.0
      %806 = vmatprep.subr.mxu0 0.0
      %807 = vmatpush1.msra.mxu0 0.0
      %808 = vmatprep.subr.mxu0 0.0
      %809 = vmatpush1.msra.mxu0 0.0
      %810 = vmatprep.subr.mxu0 0.0
      %811 = vmatpush1.msra.mxu0 0.0
      %812 = vmatprep.subr.mxu0 0.0
      %813 = vmatpush1.msra.mxu0 0.0
      %814 = vmatprep.subr.mxu0 0.0
      %815 = vmatpush1.msra.mxu0 0.0
      %816 = vmatprep.mubr.f32.mxu0 0.0
      %817 = vmatmul.mubr.f32.gmra.mrb[0].mxu0 %v699
      %v818 = vpop.f32.mrb[0].mxu0
      %v819 = vadd.f32 0.0, %v818
      %v820 = vpop.f32.mrb[0].mxu0
      %821 = vmatprep.mubr.f32.mxu0 0.0
      %822 = vmatmul.mubr.f32.gmra.mrb[0].mxu0 %v702
      %v823 = vpop.f32.mrb[0].mxu0
      %v824 = vadd.f32 0.0, %v823
      %v825 = vpop.f32.mrb[0].mxu0
      %826 = vmatprep.mubr.f32.mxu0 0.0
      %827 = vmatmul.mubr.f32.gmra.mrb[0].mxu0 %v705
      %v828 = vpop.f32.mrb[0].mxu0
      %v829 = vadd.f32 0.0, %v828
      %v830 = vpop.f32.mrb[0].mxu0
      %831 = vmatprep.mubr.f32.mxu0 0.0
      %832 = vmatmul.mubr.f32.gmra.mrb[0].mxu0 %v708
      %v833 = vpop.f32.mrb[0].mxu0
      %v834 = vadd.f32 0.0, %v833
      %v835 = vpop.f32.mrb[0].mxu0
      %836 = vmatprep.mubr.f32.mxu0 0.0
      %837 = vmatmul.mubr.f32.gmra.mrb[0].mxu0 %v711
      %v838 = vpop.f32.mrb[0].mxu0
      %v839 = vadd.f32 0.0, %v838
      %v840 = vpop.f32.mrb[0].mxu0
      %841 = vmatprep.mubr.f32.mxu0 0.0
      %842 = vmatmul.mubr.f32.gmra.mrb[0].mxu0 %v714
      %v843 = vpop.f32.mrb[0].mxu0
      %v844 = vadd.f32 0.0, %v843
      %v845 = vpop.f32.mrb[0].mxu0
      %846 = vmatprep.mubr.f32.mxu0 0.0
      %847 = vmatmul.mubr.f32.gmra.mrb[0].mxu0 %v717
      %v848 = vpop.f32.mrb[0].mxu0
      %v849 = vadd.f32 0.0, %v848
      %v850 = vpop.f32.mrb[0].mxu0
      %851 = vmatprep.mubr.f32.mxu0 0.0
      %852 = vmatmul.mubr.f32.gmra.mrb[0].mxu0 %v720
      %v853 = vpop.f32.mrb[0].mxu0
      %v854 = vadd.f32 0.0, %v853
      %v855 = vpop.f32.mrb[0].mxu0
      %856 = vmatprep.mubr.f32.mxu0 0.0
      %857 = vmatmul.mubr.f32.gmra.mrb[0].mxu0 %v723
      %v858 = vpop.f32.mrb[0].mxu0
      %v859 = vadd.f32 0.0, %v858
      %v860 = vpop.f32.mrb[0].mxu0
      %861 = vmatprep.mubr.f32.mxu0 0.0
      %862 = vmatmul.mubr.f32.gmra.mrb[0].mxu0 %v726
      %v863 = vpop.f32.mrb[0].mxu0
      %v864 = vadd.f32 0.0, %v863
      %v865 = vpop.f32.mrb[0].mxu0
      %866 = vmatprep.mubr.f32.mxu0 0.0
      %867 = vmatmul.mubr.f32.gmra.mrb[0].mxu0 %v729
      %v868 = vpop.f32.mrb[0].mxu0
      %v869 = vadd.f32 0.0, %v868
      %v870 = vpop.f32.mrb[0].mxu0
      %871 = vmatprep.mubr.f32.mxu0 0.0
      %872 = vmatmul.mubr.f32.gmra.mrb[0].mxu0 %v732
      %v873 = vpop.f32.mrb[0].mxu0
      %v874 = vadd.f32 0.0, %v873
      %v875 = vpop.f32.mrb[0].mxu0
      %876 = vmatprep.mubr.f32.mxu0 0.0
      %877 = vmatmul.mubr.f32.gmra.mrb[0].mxu0 %v735
      %v878 = vpop.f32.mrb[0].mxu0
      %v879 = vadd.f32 0.0, %v878
      %v880 = vpop.f32.mrb[0].mxu0
      %881 = vmatprep.mubr.f32.mxu0 0.0
      %882 = vmatmul.mubr.f32.gmra.mrb[0].mxu0 %v738
      %v883 = vpop.f32.mrb[0].mxu0
      %v884 = vadd.f32 0.0, %v883
      %v885 = vpop.f32.mrb[0].mxu0
      %886 = vmatprep.mubr.f32.mxu0 0.0
      %887 = vmatmul.mubr.f32.gmra.mrb[0].mxu0 %v741
      %v888 = vpop.f32.mrb[0].mxu0
      %v889 = vadd.f32 0.0, %v888
      %v890 = vpop.f32.mrb[0].mxu0
      %891 = vmatprep.mubr.f32.mxu0 0.0
      %892 = vmatmul.mubr.f32.gmra.mrb[0].mxu0 %v744
      %v893 = vpop.f32.mrb[0].mxu0
      %v894 = vadd.f32 0.0, %v893
      %v895 = vpop.f32.mrb[0].mxu0
      %896 = vmatprep.mubr.f32.mxu0 0.0
      %897 = vmatmul.mubr.f32.gmra.mrb[0].mxu0 %v747
      %v898 = vpop.f32.mrb[0].mxu0
      %v899 = vadd.f32 0.0, %v898
      %v900 = vpop.f32.mrb[0].mxu0
      %901 = vmatprep.mubr.f32.mxu0 0.0
      %902 = vmatmul.mubr.f32.gmra.mrb[0].mxu0 %v750
      %v903 = vpop.f32.mrb[0].mxu0
      %v904 = vadd.f32 0.0, %v903
      %v905 = vpop.f32.mrb[0].mxu0
      %906 = vdwg.mxu0
      %909 = vrot.lane.b32.xlu0 %v829, 127
      %v910 = vpop.permute.xlu0 %909
      %911 = vrot.lane.b32.xlu0 %v834, 127
      %v912 = vpop.permute.xlu0 %911
      %v915 = vadd.f32 %v819, %v910
      %v916 = vadd.f32 %v824, %v912
      %919 = vrot.lane.b32.xlu0 %v839, 126
      %v920 = vpop.permute.xlu0 %919
      %921 = vrot.lane.b32.xlu0 %v844, 126
      %v922 = vpop.permute.xlu0 %921
      %v925 = vadd.f32 %v915, %v920
      %v926 = vadd.f32 %v916, %v922
      %929 = vrot.lane.b32.xlu0 %v849, 121
      %v930 = vpop.permute.xlu0 %929
      %931 = vrot.lane.b32.xlu0 %v854, 121
      %v932 = vpop.permute.xlu0 %931
      %v935 = vadd.f32 %v925, %v930
      %v936 = vadd.f32 %v926, %v932
      %939 = vrot.lane.b32.xlu0 %v859, 120
      %v940 = vpop.permute.xlu0 %939
      %941 = vrot.lane.b32.xlu0 %v864, 120
      %v942 = vpop.permute.xlu0 %941
      %v945 = vadd.f32 %v935, %v940
      %v946 = vadd.f32 %v936, %v942
      %949 = vrot.lane.b32.xlu0 %v869, 119
      %v950 = vpop.permute.xlu0 %949
      %951 = vrot.lane.b32.xlu0 %v874, 119
      %v952 = vpop.permute.xlu0 %951
      %v955 = vadd.f32 %v945, %v950
      %v956 = vadd.f32 %v946, %v952
      %959 = vrot.lane.b32.xlu0 %v879, 114
      %v960 = vpop.permute.xlu0 %959
      %961 = vrot.lane.b32.xlu0 %v884, 114
      %v962 = vpop.permute.xlu0 %961
      %v965 = vadd.f32 %v955, %v960
      %v966 = vadd.f32 %v956, %v962
      %969 = vrot.lane.b32.xlu0 %v889, 113
      %v970 = vpop.permute.xlu0 %969
      %971 = vrot.lane.b32.xlu0 %v894, 113
      %v972 = vpop.permute.xlu0 %971
      %v975 = vadd.f32 %v965, %v970
      %v976 = vadd.f32 %v966, %v972
      %979 = vrot.lane.b32.xlu0 %v899, 112
      %v980 = vpop.permute.xlu0 %979
      %981 = vrot.lane.b32.xlu0 %v904, 112
      %v982 = vpop.permute.xlu0 %981
      %v985 = vadd.f32 %v975, %v980
      %v986 = vadd.f32 %v976, %v982
      %989 = vrot.lane.b32.xlu0 %v985, 127
      %v990 = vpop.permute.xlu0 %989
      %991 = vrot.lane.b32.xlu0 %v986, 127
      %v992 = vpop.permute.xlu0 %991
      %v995 = vmax.f32 %v985, %v990
      %v996 = vmax.f32 %v986, %v992
      %997 = vrot.lane.b32.xlu0 %v985, 121
      %v998 = vpop.permute.xlu0 %997
      %999 = vrot.lane.b32.xlu0 %v986, 121
      %v1000 = vpop.permute.xlu0 %999
      %v1003 = vmax.f32 %v995, %v998
      %v1004 = vmax.f32 %v996, %v1000
      %1005 = vrot.lane.b32.xlu0 %v985, 120
      %v1006 = vpop.permute.xlu0 %1005
      %1007 = vrot.lane.b32.xlu0 %v986, 120
      %v1008 = vpop.permute.xlu0 %1007
      %v1011 = vmax.f32 %v1003, %v1006
      %v1012 = vmax.f32 %v1004, %v1008
      %v1013 = vld [vmem:[%s6] sm:$0xff]
      %v1014 = vld [vmem:[%s6 + $0x8] sm:$0xff]
      %v1015 = vld [vmem:[%s6 + $0x10] sm:$0x1]
      %v1016 = vld [vmem:[%s5] sm:$0xff]
      %v1017 = vld [vmem:[%s5 + $0x8] sm:$0xff]
      %1019 = vset.pattern.permute.xlu0 0
      %1020 = vperm.xlu0 %1019, %v1016
      %v1021 = vpop.permute.xlu0 %1020
      %1024 = vset.pattern.permute.xlu0 0
      %1025 = vperm.xlu0 %1024, %v1017
      %v1026 = vpop.permute.xlu0 %1025
      %vm1028 = vcmask 138240
      %v1030 = vsel %vm1028, %v1011, 0
      %v1033 = vsel %vm1028, %v1012, 0
      %vm1035 = vcmask 1040384
      %v1037 = vsel %vm1035, %v1015, 0
      %1039 = vmatprep.subr.mxu0 0.0
      %1040 = vmatpush1.msra.mxu0 %v1013
      %1041 = vmatprep.subr.mxu0 0.0
      %1042 = vmatpush1.msra.mxu0 %v1014
      %1043 = vmatprep.subr.mxu0 0.0
      %1044 = vmatpush1.msra.mxu0 %v1037
      %1045 = vmatprep.subr.mxu0 0.0
      %1046 = vmatpush1.msra.mxu0 0.0
      %1047 = vmatprep.subr.mxu0 0.0
      %1048 = vmatpush1.msra.mxu0 0.0
      %1049 = vmatprep.subr.mxu0 0.0
      %1050 = vmatpush1.msra.mxu0 0.0
      %1051 = vmatprep.subr.mxu0 0.0
      %1052 = vmatpush1.msra.mxu0 0.0
      %1053 = vmatprep.subr.mxu0 0.0
      %1054 = vmatpush1.msra.mxu0 0.0
      %1055 = vmatprep.subr.mxu0 0.0
      %1056 = vmatpush1.msra.mxu0 0.0
      %1057 = vmatprep.subr.mxu0 0.0
      %1058 = vmatpush1.msra.mxu0 0.0
      %1059 = vmatprep.subr.mxu0 0.0
      %1060 = vmatpush1.msra.mxu0 0.0
      %1061 = vmatprep.subr.mxu0 0.0
      %1062 = vmatpush1.msra.mxu0 0.0
      %1063 = vmatprep.subr.mxu0 0.0
      %1064 = vmatpush1.msra.mxu0 0.0
      %1065 = vmatprep.subr.mxu0 0.0
      %1066 = vmatpush1.msra.mxu0 0.0
      %1067 = vmatprep.subr.mxu0 0.0
      %1068 = vmatpush1.msra.mxu0 0.0
      %1069 = vmatprep.subr.mxu0 0.0
      %1070 = vmatpush1.msra.mxu0 0.0
      %1071 = vmatprep.subr.mxu0 0.0
      %1072 = vmatpush1.msra.mxu0 0.0
      %1073 = vmatprep.subr.mxu0 0.0
      %1074 = vmatpush1.msra.mxu0 0.0
      %1075 = vmatprep.subr.mxu0 0.0
      %1076 = vmatpush1.msra.mxu0 0.0
      %1077 = vmatprep.subr.mxu0 0.0
      %1078 = vmatpush1.msra.mxu0 0.0
      %1079 = vmatprep.subr.mxu0 0.0
      %1080 = vmatpush1.msra.mxu0 0.0
      %1081 = vmatprep.subr.mxu0 0.0
      %1082 = vmatpush1.msra.mxu0 0.0
      %1083 = vmatprep.subr.mxu0 0.0
      %1084 = vmatpush1.msra.mxu0 0.0
      %1085 = vmatprep.subr.mxu0 0.0
      %1086 = vmatpush1.msra.mxu0 0.0
      %1087 = vmatprep.subr.mxu0 0.0
      %1088 = vmatpush1.msra.mxu0 0.0
      %1089 = vmatprep.subr.mxu0 0.0
      %1090 = vmatpush1.msra.mxu0 0.0
      %1091 = vmatprep.subr.mxu0 0.0
      %1092 = vmatpush1.msra.mxu0 0.0
      %1093 = vmatprep.subr.mxu0 0.0
      %1094 = vmatpush1.msra.mxu0 0.0
      %1095 = vmatprep.subr.mxu0 0.0
      %1096 = vmatpush1.msra.mxu0 0.0
      %1097 = vmatprep.subr.mxu0 0.0
      %1098 = vmatpush1.msra.mxu0 0.0
      %1099 = vmatprep.subr.mxu0 0.0
      %1100 = vmatpush1.msra.mxu0 0.0
      %1101 = vmatprep.subr.mxu0 0.0
      %1102 = vmatpush1.msra.mxu0 0.0
      %1103 = vmatprep.mubr.f32.mxu0 0.0
      %1104 = vmatmul.mubr.f32.gmra.mrb[0].mxu0 %v1030
      %v1105 = vpop.f32.mrb[0].mxu0
      %v1106 = vadd.f32 %v1021, %v1105
      %v1107 = vpop.f32.mrb[0].mxu0
      %1108 = vmatprep.mubr.f32.mxu0 0.0
      %1109 = vmatmul.mubr.f32.gmra.mrb[0].mxu0 %v1033
      %v1110 = vpop.f32.mrb[0].mxu0
      %v1111 = vadd.f32 %v1026, %v1110
      %v1112 = vpop.f32.mrb[0].mxu0
      %1113 = vdwg.mxu0
      %v1114 = vtanh.pop %v1106
      %v1115 = vtanh.pop %v1111
      %1116 = vst.msk [vmem:[%s278] sm:$0xff] %vm291, %v1114
      %1117 = vst.msk [vmem:[%s278 + $0x8] sm:$0xff] %vm291, %v1115
      %p1118 = scmp.lt.s32.totalorder %s18, 1
      %s1119 = scalar_select %p1118, %s18, 1
      %s1120 = smul.addr %s1119, 2
      %s1121 = smul.addr %s1120, 8
      %s1122 = scalar_lea.vmem %s7, %s1121
      // Predicated region
      $region49: #{actor_encode.1} parent=47 // pred_check
        %p1123 = pneg %p188
      $region50: #{actor_encode.1} parent=47 // pred_check_branch
        %1125 = sbr.rel (%p1123) target = $region52
      $region51: #{actor_encode.1} parent=47 // pred_region
        _
      $region52: #{actor_encode.1} parent=47 // pred_fallthru
        _
    $region48: #{actor_encode.1} parent=5 // pred_fallthru
      _
    %p1126 = scmp.le.s32.totalorder 2, %s13
    // Predicated region
    $region53: #{actor_encode.1} parent=5 // pred_check
      %p1127 = pneg %p1126
    $region54: #{actor_encode.1} parent=5 // pred_check_branch
      %1129 = sbr.rel (%p1127) target = $region56
    $region55: #{actor_encode.1} parent=5 // pred_region
      %s1130 = ssub.s32 %s13, 2
      // Predicated region
      $region57: #{actor_encode.1} parent=55 // pred_check
        %p1131 = pneg %p194
      $region58: #{actor_encode.1} parent=55 // pred_check_branch
        %1133 = sbr.rel (%p1131) target = $region60
      $region59: #{actor_encode.1} parent=55 // pred_region
        %p1134 = scmp.lt.s32.totalorder %s19, 1
        %s1135 = scalar_select %p1134, %s19, 1
        %s1136 = smul.addr %s1135, 2
        %s1137 = smul.addr %s1136, 8
        %s1138 = scalar_lea.vmem %s7, %s1137
      $region60: #{actor_encode.1} parent=55 // pred_fallthru
        _
    $region56: #{actor_encode.1} parent=5 // pred_fallthru
      _
  $region6: #{actor_encode.1} parent=0 // loop_footer
    %s17 = sadd.s32 1, %s13
  $region7: #{actor_encode.1} parent=0 // loop_footer_branch
    %12 = sbr.rel target = $region3
  $region8: #{actor_encode.1} parent=0 // loop_exit
    _

</llo_original>
